<compile_context>
chip_gen: v7x
topology: tpu7x:2x2x1
jax: 0.10.0
libtpu: 0.0.40
codegen_flags: <defaults>
</compile_context>

<pallas_src>
import jax
import jax.numpy as jnp
from jax.experimental import pallas as pl
from jax.experimental.pallas import tpu as pltpu


def pa_layer_kernel(x_ref, w1_ref, b1_ref, w2_ref, b2_ref, o_ref):
    # x_ref : (TB, W, C)  -- native layout, reduce over the lane (C) axis (XLU,
    #                        idle slot in this DMA-bound kernel)
    # w1_ref: (W, H)  b1_ref: (1, H)  w2_ref: (H, W)  b2_ref: (1, W)
    # o_ref : (TB, W)
    y = jnp.max(x_ref[...], axis=-1).astype(jnp.float32)               # (TB, W)
    h = jnp.dot(y, w1_ref[...], preferred_element_type=jnp.float32) + b1_ref[...]
    h = jnp.maximum(h, 0.0)                                             # ReLU
    out = jnp.dot(h, w2_ref[...], preferred_element_type=jnp.float32) + b2_ref[...]
    o_ref[...] = out.astype(o_ref.dtype)


def pa_layer(x, w1, b1, w2, b2, *, tb_target=1024):
    """PALayer forward.

    x : (B, W, C)   -- torch (b, w, c) ordering, streamed as-is (no transpose)
    w1: (H, W), b1: (H,)   -- torch nn.Linear(dim_pa, dim_pa // r) layout
    w2: (W, H), b2: (W,)   -- torch nn.Linear(dim_pa // r, dim_pa) layout
    returns (B, W, 1)
    """
    b, w, c = x.shape
    h = w1.shape[0]

    # torch Linear stores (out, in); transpose the tiny weights once so the
    # kernel computes y @ W^T.  Biases are kept 2-D for clean broadcasting.
    w1_t = jnp.transpose(w1)                    # (W, H)
    w2_t = jnp.transpose(w2)                    # (H, W)
    b1_2d = b1.reshape(1, h).astype(jnp.float32)
    b2_2d = b2.reshape(1, w).astype(jnp.float32)

    # Batch-tile selection:
    #   * big enough to amortize per-grid-step overhead,
    #   * keep the grid >= ~8 steps when B allows (pipelining + megacore),
    #   * sublane-align so the (tb, w) output block is legal,
    #   * no padding of x -- the last (partial) block is masked by Pallas.
    if b <= 8:
        tb = b                                   # tb == full batch dim -> legal block
    else:
        tb = min(tb_target, -(-b // 8))          # aim for >= ~8 grid steps
        tb = -(-tb // 8) * 8                     # multiple of 8 (sublane constraint)
    grid = (pl.cdiv(b, tb),)

    itemsize = jnp.dtype(x.dtype).itemsize
    cost = pl.CostEstimate(
        flops=4 * b * w * h,                                   # two tiny matmuls
        transcendentals=0,
        bytes_accessed=b * w * c * itemsize + b * w * itemsize
        + (w * h + h * w) * 4 + (h + w) * 4,
    )

    out2d = pl.pallas_call(
        pa_layer_kernel,
        out_shape=jax.ShapeDtypeStruct((b, w), x.dtype),
        grid=grid,
        in_specs=[
            pl.BlockSpec((tb, w, c), lambda i: (i, 0, 0)),     # streamed x (native layout)
            pl.BlockSpec((w, h), lambda i: (0, 0)),            # resident W1^T
            pl.BlockSpec((1, h), lambda i: (0, 0)),            # resident b1
            pl.BlockSpec((h, w), lambda i: (0, 0)),            # resident W2^T
            pl.BlockSpec((1, w), lambda i: (0, 0)),            # resident b2
        ],
        out_specs=pl.BlockSpec((tb, w), lambda i: (i, 0)),
        compiler_params=pltpu.CompilerParams(
            dimension_semantics=("parallel",),                 # megacore on v7x
            vmem_limit_bytes=48 * 1024 * 1024,                 # fits v7x 64 MiB w/ headroom
        ),
        cost_estimate=cost,
    )(x, w1_t, b1_2d, w2_t, b2_2d)

    return out2d.reshape(b, w, 1)               # matches torch .view(b, w, 1)


def _reference(x, w1, b1, w2, b2):
    y = jnp.max(x, axis=2)                                     # (B, W)
    hh = jnp.maximum(y @ w1.T + b1, 0.0)
    out = hh @ w2.T + b2
    return out.reshape(x.shape[0], x.shape[1], 1)


if __name__ == "__main__":
    # Shapes consistent with the module: dim_pa (== w) = 32, reduction_pa = 4.
    W, RED, C = 32, 4, 16
    H = W // RED

    key = jax.random.PRNGKey(0)
    kx, k1, k2, k3, k4, kx2 = jax.random.split(key, 6)

    # Deterministic synthetic parameters (torch nn.Linear layout: (out, in)).
    w1 = jax.random.normal(k1, (H, W), dtype=jnp.float32) * 0.1
    b1 = jax.random.normal(k2, (H,), dtype=jnp.float32) * 0.1
    w2 = jax.random.normal(k3, (W, H), dtype=jnp.float32) * 0.1
    b2 = jax.random.normal(k4, (W,), dtype=jnp.float32) * 0.1

    # Case 1: tiny batch (single grid step, tb == b path).
    B1 = 2
    x1 = jax.random.normal(kx, (B1, W, C), dtype=jnp.float32)
    out1 = jax.block_until_ready(pa_layer(x1, w1, b1, w2, b2))
    ref1 = _reference(x1, w1, b1, w2, b2)
    assert out1.shape == (B1, W, 1), out1.shape
    assert jnp.allclose(out1, ref1, atol=1e-5, rtol=1e-5), "mismatch (small batch)"

    # Case 2: batch exercising the B-grid tiling + masked (non-divisible) tail.
    B2 = 70
    x2 = jax.random.normal(kx2, (B2, W, C), dtype=jnp.float32)
    out2 = jax.block_until_ready(pa_layer(x2, w1, b1, w2, b2, tb_target=32))
    ref2 = _reference(x2, w1, b1, w2, b2)
    assert out2.shape == (B2, W, 1), out2.shape
    assert jnp.allclose(out2, ref2, atol=1e-5, rtol=1e-5), "mismatch (tiled batch)"

    print("KERNEL_OK")
</pallas_src>

<mosaic_0001>
module attributes {stable_mosaic.version = 11 : i64} {
  func.func @pa_layer_kernel(%arg0: i32, %arg1: memref<2x32x16xf32, #tpu.memory_space<vmem>>, %arg2: memref<32x8xf32, #tpu.memory_space<vmem>>, %arg3: memref<1x8xf32, #tpu.memory_space<vmem>>, %arg4: memref<8x32xf32, #tpu.memory_space<vmem>>, %arg5: memref<1x32xf32, #tpu.memory_space<vmem>>, %arg6: memref<2x32xf32, #tpu.memory_space<vmem>>) attributes {dimension_semantics = [#tpu.dimension_semantics<parallel>], iteration_bounds = array<i64: 1>, scalar_prefetch = 0 : i64, scratch_operands = 0 : i64, tpu.core_type = #tpu.core_type<tc>, window_params = [{transform_indices = @transform_0, window_bounds = array<i64: 2, 32, 16>}, {pipeline_mode = #tpu.pipeline_mode<synchronous>, transform_indices = @transform_1, window_bounds = array<i64: 32, 8>}, {pipeline_mode = #tpu.pipeline_mode<synchronous>, transform_indices = @transform_2, window_bounds = array<i64: 1, 8>}, {pipeline_mode = #tpu.pipeline_mode<synchronous>, transform_indices = @transform_3, window_bounds = array<i64: 8, 32>}, {pipeline_mode = #tpu.pipeline_mode<synchronous>, transform_indices = @transform_4, window_bounds = array<i64: 1, 32>}, {transform_indices = @transform_5, window_bounds = array<i64: 2, 32>}]} {
    %c0 = arith.constant 0 : index
    %c0_0 = arith.constant 0 : index
    %c0_1 = arith.constant 0 : index
    %0 = vector.load %arg1[%c0, %c0_0, %c0_1] : memref<2x32x16xf32, #tpu.memory_space<vmem>>, vector<2x32x16xf32>
    %cst = arith.constant dense<0xFF800000> : vector<2x32xf32>
    %1 = vector.multi_reduction <maximumf>, %0, %cst [2] : vector<2x32x16xf32> to vector<2x32xf32>
    %c0_2 = arith.constant 0 : index
    %c0_3 = arith.constant 0 : index
    %2 = vector.load %arg2[%c0_2, %c0_3] : memref<32x8xf32, #tpu.memory_space<vmem>>, vector<32x8xf32>
    %cst_4 = arith.constant dense<0.000000e+00> : vector<2x8xf32>
    %3 = tpu.matmul %1, %2, %cst_4 {dimension_numbers = #tpu.dot_dimension_numbers<[1], [0], [0], [1], [0, 0, 1, 1], [], []>} : vector<2x32xf32>, vector<32x8xf32>, vector<2x8xf32> -> vector<2x8xf32>
    %c0_5 = arith.constant 0 : index
    %c0_6 = arith.constant 0 : index
    %4 = vector.load %arg3[%c0_5, %c0_6] : memref<1x8xf32, #tpu.memory_space<vmem>>, vector<1x8xf32>
    %5 = vector.broadcast %4 : vector<1x8xf32> to vector<2x8xf32>
    %6 = arith.addf %3, %5 : vector<2x8xf32>
    %cst_7 = arith.constant 0.000000e+00 : f32
    %7 = vector.broadcast %cst_7 : f32 to vector<2x8xf32>
    %8 = arith.maximumf %6, %7 : vector<2x8xf32>
    %c0_8 = arith.constant 0 : index
    %c0_9 = arith.constant 0 : index
    %9 = vector.load %arg4[%c0_8, %c0_9] : memref<8x32xf32, #tpu.memory_space<vmem>>, vector<8x32xf32>
    %cst_10 = arith.constant dense<0.000000e+00> : vector<2x32xf32>
    %10 = tpu.matmul %8, %9, %cst_10 {dimension_numbers = #tpu.dot_dimension_numbers<[1], [0], [0], [1], [0, 0, 1, 1], [], []>} : vector<2x8xf32>, vector<8x32xf32>, vector<2x32xf32> -> vector<2x32xf32>
    %c0_11 = arith.constant 0 : index
    %c0_12 = arith.constant 0 : index
    %11 = vector.load %arg5[%c0_11, %c0_12] : memref<1x32xf32, #tpu.memory_space<vmem>>, vector<1x32xf32>
    %12 = vector.broadcast %11 : vector<1x32xf32> to vector<2x32xf32>
    %13 = arith.addf %10, %12 : vector<2x32xf32>
    %c0_13 = arith.constant 0 : index
    %c0_14 = arith.constant 0 : index
    %14 = vector.load %arg6[%c0_13, %c0_14] : memref<2x32xf32, #tpu.memory_space<vmem>>, vector<2x32xf32>
    tpu.vector_store %arg6[%c0_13, %c0_14], %13 {strides = array<i32>} : memref<2x32xf32, #tpu.memory_space<vmem>>, vector<2x32xf32>,
    return
  }
  func.func @transform_0(%arg0: i32) -> (i32, i32, i32) {
    %c0_i32 = arith.constant 0 : i32
    %c0_i32_0 = arith.constant 0 : i32
    %c0_i32_1 = arith.constant 0 : i32
    return %arg0, %c0_i32, %c0_i32_0 : i32, i32, i32
  }
  func.func @transform_1(%arg0: i32) -> (i32, i32) {
    %c0_i32 = arith.constant 0 : i32
    %c0_i32_0 = arith.constant 0 : i32
    %c0_i32_1 = arith.constant 0 : i32
    return %c0_i32, %c0_i32_0 : i32, i32
  }
  func.func @transform_2(%arg0: i32) -> (i32, i32) {
    %c0_i32 = arith.constant 0 : i32
    %c0_i32_0 = arith.constant 0 : i32
    %c0_i32_1 = arith.constant 0 : i32
    return %c0_i32, %c0_i32_0 : i32, i32
  }
  func.func @transform_3(%arg0: i32) -> (i32, i32) {
    %c0_i32 = arith.constant 0 : i32
    %c0_i32_0 = arith.constant 0 : i32
    %c0_i32_1 = arith.constant 0 : i32
    return %c0_i32, %c0_i32_0 : i32, i32
  }
  func.func @transform_4(%arg0: i32) -> (i32, i32) {
    %c0_i32 = arith.constant 0 : i32
    %c0_i32_0 = arith.constant 0 : i32
    %c0_i32_1 = arith.constant 0 : i32
    return %c0_i32, %c0_i32_0 : i32, i32
  }
  func.func @transform_5(%arg0: i32) -> (i32, i32) {
    %c0_i32 = arith.constant 0 : i32
    %c0_i32_0 = arith.constant 0 : i32
    return %arg0, %c0_i32 : i32, i32
  }
}

</mosaic_0001>

<llo_original>
// kernel: tpu_custom_call.1
$region0: #{tpu_custom_call.1}
  #allocation0 [shape = 'u32[]', space=smem, size = 0x4, offset = 0x4, fixed_abs, tag = 'smem constant byte address 0x4 - core index']
  #allocation1 [shape = 'u32[144,128]{1,0:T(1,128)}', space=vmem, size = 0x12000, scoped, tag = 'internal scratch']
  %s0 = inlined_call_operand.vmem [shape: f32[2,32,16], index: 0, kind: input, shape index: {}]
  %s1 = inlined_call_operand.vmem [shape: f32[32,8], index: 1, kind: input, shape index: {}]
  %s2 = inlined_call_operand.vmem [shape: f32[1,8], index: 2, kind: input, shape index: {}]
  %s3 = inlined_call_operand.vmem [shape: f32[8,32], index: 3, kind: input, shape index: {}]
  %s4 = inlined_call_operand.vmem [shape: f32[1,32], index: 4, kind: input, shape index: {}]
  %s5 = inlined_call_operand.hbm [shape: f32[2,32], index: 5, kind: output, shape index: {}]
  %s6 = sld [smem:[#allocation0]]
  $region30: #{tpu_custom_call.1} parent=0
    _
  %s8 = ssub.s32 1, %s6
  %s9 = scalar_select 0, %s8, %s6
  $region1: #{tpu_custom_call.1} parent=0
    #allocation2 [shape = 'u8[1024]{0}', space=vmem, size = 0x400, scoped, tag = 'output window, operand 0, single buffered']
    #allocation3 [shape = 's32[1]{0}', space=sflag, size = 0x4, scoped, tag = 'scoped memory for tpu_custom_call.1']
    %10 = vsyncpa [#allocation3], 0
    // Predicated region
    $region2: #{tpu_custom_call.1} parent=1 // pred_check
      _
    $region3: #{tpu_custom_call.1} parent=1 // pred_check_branch
      %12 = sbr.rel (0) target = $region5
    $region4: #{tpu_custom_call.1} parent=1 // pred_region
      _
    $region5: #{tpu_custom_call.1} parent=1 // pred_fallthru
      _
    // Predicated region
    $region6: #{tpu_custom_call.1} parent=1 // pred_check
      _
    $region7: #{tpu_custom_call.1} parent=1 // pred_check_branch
      %14 = sbr.rel (0) target = $region9
    $region8: #{tpu_custom_call.1} parent=1 // pred_region
      _
    $region9: #{tpu_custom_call.1} parent=1 // pred_fallthru
      _
    // Predicated region
    $region10: #{tpu_custom_call.1} parent=1 // pred_check
      _
    $region11: #{tpu_custom_call.1} parent=1 // pred_check_branch
      %16 = sbr.rel (0) target = $region13
    $region12: #{tpu_custom_call.1} parent=1 // pred_region
      _
    $region13: #{tpu_custom_call.1} parent=1 // pred_fallthru
      _
    // Predicated region
    $region14: #{tpu_custom_call.1} parent=1 // pred_check
      _
    $region15: #{tpu_custom_call.1} parent=1 // pred_check_branch
      %18 = sbr.rel (0) target = $region17
    $region16: #{tpu_custom_call.1} parent=1 // pred_region
      _
    $region17: #{tpu_custom_call.1} parent=1 // pred_fallthru
      _
    // Predicated region
    $region18: #{tpu_custom_call.1} parent=1 // pred_check
      _
    $region19: #{tpu_custom_call.1} parent=1 // pred_check_branch
      %20 = sbr.rel (0) target = $region21
    $region20: #{tpu_custom_call.1} parent=1 // pred_region
      _
    $region21: #{tpu_custom_call.1} parent=1 // pred_fallthru
      _
    %v21 = vld [vmem:[%s0] sm:$0xff]
    %v22 = vld [vmem:[%s0 + $0x8] sm:$0xff]
    %v23 = vld [vmem:[%s0 + $0x10] sm:$0xff]
    %v24 = vld [vmem:[%s0 + $0x18] sm:$0xff]
    %v25 = vld [vmem:[%s0 + $0x20] sm:$0xff]
    %v26 = vld [vmem:[%s0 + $0x28] sm:$0xff]
    %v27 = vld [vmem:[%s0 + $0x30] sm:$0xff]
    %v28 = vld [vmem:[%s0 + $0x38] sm:$0xff]
    %vm29 = vcmask 130048
    %v30 = vsel %vm29, %v21, -inf
    %31 = vmax.xlane.f32.xlu0 %v30
    %v32 = vpop.xlane.xlu0 %31
    %v33 = vsel %vm29, %v22, -inf
    %34 = vmax.xlane.f32.xlu0 %v33
    %v35 = vpop.xlane.xlu0 %34
    %v36 = vsel %vm29, %v23, -inf
    %37 = vmax.xlane.f32.xlu0 %v36
    %v38 = vpop.xlane.xlu0 %37
    %v39 = vsel %vm29, %v24, -inf
    %40 = vmax.xlane.f32.xlu0 %v39
    %v41 = vpop.xlane.xlu0 %40
    %v42 = vsel %vm29, %v25, -inf
    %43 = vmax.xlane.f32.xlu0 %v42
    %v44 = vpop.xlane.xlu0 %43
    %v45 = vsel %vm29, %v26, -inf
    %46 = vmax.xlane.f32.xlu0 %v45
    %v47 = vpop.xlane.xlu0 %46
    %v48 = vsel %vm29, %v27, -inf
    %49 = vmax.xlane.f32.xlu0 %v48
    %v50 = vpop.xlane.xlu0 %49
    %v51 = vsel %vm29, %v28, -inf
    %52 = vmax.xlane.f32.xlu0 %v51
    %v53 = vpop.xlane.xlu0 %52
    %v54 = vld [vmem:[%s1] sm:$0xff]
    %v55 = vld [vmem:[%s1 + $0x8] sm:$0xff]
    %v56 = vld [vmem:[%s1 + $0x10] sm:$0xff]
    %v57 = vld [vmem:[%s1 + $0x18] sm:$0xff]
    %v58 = vld [vmem:[%s2] sm:$0x1]
    %v60 = vlaneseq
    %v61 = vshrl.u32 %v60, 7
    %v62 = vsub.s32 0, %v61
    %v63 = vrot.slane %v58, %v62
    %v73 = vlaneseq
    %v74 = vand.u32 %v73, 127
    %v75 = vlaneseq
    %v76 = vshrl.u32 %v75, 7
    %v77 = vsub.s32 %v74, %v76
    %v78 = vrot.slane %v32, %v77
    %v79 = vadd.s32 %v74, 4294967288
    %v80 = vlaneseq
    %v81 = vshrl.u32 %v80, 7
    %v82 = vsub.s32 %v79, %v81
    %v83 = vrot.slane %v35, %v82
    %vm84 = vcmask 130112
    %v85 = vsel %vm84, %v83, %v78
    %v86 = vadd.s32 %v74, 4294967280
    %v87 = vlaneseq
    %v88 = vshrl.u32 %v87, 7
    %v89 = vsub.s32 %v86, %v88
    %v90 = vrot.slane %v38, %v89
    %vm91 = vcmask 195712
    %v92 = vsel %vm91, %v90, %v85
    %v93 = vadd.s32 %v74, 4294967272
    %v94 = vlaneseq
    %v95 = vshrl.u32 %v94, 7
    %v96 = vsub.s32 %v93, %v95
    %v97 = vrot.slane %v41, %v96
    %vm98 = vcmask 261312
    %v99 = vsel %vm98, %v97, %v92
    %v100 = vlaneseq
    %v101 = vshrl.u32 %v100, 7
    %v102 = vsub.s32 %v74, %v101
    %v103 = vrot.slane %v44, %v102
    %v104 = vlaneseq
    %v105 = vshrl.u32 %v104, 7
    %v106 = vsub.s32 %v79, %v105
    %v107 = vrot.slane %v47, %v106
    %v108 = vsel %vm84, %v107, %v103
    %v109 = vlaneseq
    %v110 = vshrl.u32 %v109, 7
    %v111 = vsub.s32 %v86, %v110
    %v112 = vrot.slane %v50, %v111
    %v113 = vsel %vm91, %v112, %v108
    %v114 = vlaneseq
    %v115 = vshrl.u32 %v114, 7
    %v116 = vsub.s32 %v93, %v115
    %v117 = vrot.slane %v53, %v116
    %v118 = vsel %vm98, %v117, %v113
    %vm119 = vcmask 1041409
    %v120 = vsel %vm119, %v118, %v99
    %vm121 = vcmask 261120
    %v122 = vsel %vm121, %v120, 0
    %124 = vmatprep.subr.mxu0 0.0
    %125 = vmatpush1.msra.mxu0 %v54
    %126 = vmatprep.subr.mxu0 0.0
    %127 = vmatpush1.msra.mxu0 %v55
    %128 = vmatprep.subr.mxu0 0.0
    %129 = vmatpush1.msra.mxu0 %v56
    %130 = vmatprep.subr.mxu0 0.0
    %131 = vmatpush1.msra.mxu0 %v57
    %132 = vmatprep.subr.mxu0 0.0
    %133 = vmatpush1.msra.mxu0 0.0
    %134 = vmatprep.subr.mxu0 0.0
    %135 = vmatpush1.msra.mxu0 0.0
    %136 = vmatprep.subr.mxu0 0.0
    %137 = vmatpush1.msra.mxu0 0.0
    %138 = vmatprep.subr.mxu0 0.0
    %139 = vmatpush1.msra.mxu0 0.0
    %140 = vmatprep.subr.mxu0 0.0
    %141 = vmatpush1.msra.mxu0 0.0
    %142 = vmatprep.subr.mxu0 0.0
    %143 = vmatpush1.msra.mxu0 0.0
    %144 = vmatprep.subr.mxu0 0.0
    %145 = vmatpush1.msra.mxu0 0.0
    %146 = vmatprep.subr.mxu0 0.0
    %147 = vmatpush1.msra.mxu0 0.0
    %148 = vmatprep.subr.mxu0 0.0
    %149 = vmatpush1.msra.mxu0 0.0
    %150 = vmatprep.subr.mxu0 0.0
    %151 = vmatpush1.msra.mxu0 0.0
    %152 = vmatprep.subr.mxu0 0.0
    %153 = vmatpush1.msra.mxu0 0.0
    %154 = vmatprep.subr.mxu0 0.0
    %155 = vmatpush1.msra.mxu0 0.0
    %156 = vmatprep.subr.mxu0 0.0
    %157 = vmatpush1.msra.mxu0 0.0
    %158 = vmatprep.subr.mxu0 0.0
    %159 = vmatpush1.msra.mxu0 0.0
    %160 = vmatprep.subr.mxu0 0.0
    %161 = vmatpush1.msra.mxu0 0.0
    %162 = vmatprep.subr.mxu0 0.0
    %163 = vmatpush1.msra.mxu0 0.0
    %164 = vmatprep.subr.mxu0 0.0
    %165 = vmatpush1.msra.mxu0 0.0
    %166 = vmatprep.subr.mxu0 0.0
    %167 = vmatpush1.msra.mxu0 0.0
    %168 = vmatprep.subr.mxu0 0.0
    %169 = vmatpush1.msra.mxu0 0.0
    %170 = vmatprep.subr.mxu0 0.0
    %171 = vmatpush1.msra.mxu0 0.0
    %172 = vmatprep.subr.mxu0 0.0
    %173 = vmatpush1.msra.mxu0 0.0
    %174 = vmatprep.subr.mxu0 0.0
    %175 = vmatpush1.msra.mxu0 0.0
    %176 = vmatprep.subr.mxu0 0.0
    %177 = vmatpush1.msra.mxu0 0.0
    %178 = vmatprep.subr.mxu0 0.0
    %179 = vmatpush1.msra.mxu0 0.0
    %180 = vmatprep.subr.mxu0 0.0
    %181 = vmatpush1.msra.mxu0 0.0
    %182 = vmatprep.subr.mxu0 0.0
    %183 = vmatpush1.msra.mxu0 0.0
    %184 = vmatprep.subr.mxu0 0.0
    %185 = vmatpush1.msra.mxu0 0.0
    %186 = vmatprep.subr.mxu0 0.0
    %187 = vmatpush1.msra.mxu0 0.0
    %188 = vmatprep.mubr.f32.mxu0 0.0
    %189 = vmatmul.mubr.f32.gmra.mrb[0].mxu0 %v122
    %v190 = vpop.f32.mrb[0].mxu0
    %v191 = vadd.f32 %v63, %v190
    %v192 = vpop.f32.mrb[0].mxu0
    %193 = vdwg.mxu0
    %v194 = vmax.f32 %v191, 0.0
    %v195 = vld [vmem:[%s3] sm:$0xff]
    %v196 = vld [vmem:[%s4] sm:$0x1]
    %v198 = vlaneseq
    %v199 = vshrl.u32 %v198, 7
    %v200 = vsub.s32 0, %v199
    %v201 = vrot.slane %v196, %v200
    %vm203 = vcmask 64512
    %v205 = vsel %vm203, %v194, 0
    %207 = vmatprep.subr.mxu0 0.0
    %208 = vmatpush1.msra.mxu0 %v195
    %209 = vmatprep.subr.mxu0 0.0
    %210 = vmatpush1.msra.mxu0 0.0
    %211 = vmatprep.subr.mxu0 0.0
    %212 = vmatpush1.msra.mxu0 0.0
    %213 = vmatprep.subr.mxu0 0.0
    %214 = vmatpush1.msra.mxu0 0.0
    %215 = vmatprep.subr.mxu0 0.0
    %216 = vmatpush1.msra.mxu0 0.0
    %217 = vmatprep.subr.mxu0 0.0
    %218 = vmatpush1.msra.mxu0 0.0
    %219 = vmatprep.subr.mxu0 0.0
    %220 = vmatpush1.msra.mxu0 0.0
    %221 = vmatprep.subr.mxu0 0.0
    %222 = vmatpush1.msra.mxu0 0.0
    %223 = vmatprep.subr.mxu0 0.0
    %224 = vmatpush1.msra.mxu0 0.0
    %225 = vmatprep.subr.mxu0 0.0
    %226 = vmatpush1.msra.mxu0 0.0
    %227 = vmatprep.subr.mxu0 0.0
    %228 = vmatpush1.msra.mxu0 0.0
    %229 = vmatprep.subr.mxu0 0.0
    %230 = vmatpush1.msra.mxu0 0.0
    %231 = vmatprep.subr.mxu0 0.0
    %232 = vmatpush1.msra.mxu0 0.0
    %233 = vmatprep.subr.mxu0 0.0
    %234 = vmatpush1.msra.mxu0 0.0
    %235 = vmatprep.subr.mxu0 0.0
    %236 = vmatpush1.msra.mxu0 0.0
    %237 = vmatprep.subr.mxu0 0.0
    %238 = vmatpush1.msra.mxu0 0.0
    %239 = vmatprep.subr.mxu0 0.0
    %240 = vmatpush1.msra.mxu0 0.0
    %241 = vmatprep.subr.mxu0 0.0
    %242 = vmatpush1.msra.mxu0 0.0
    %243 = vmatprep.subr.mxu0 0.0
    %244 = vmatpush1.msra.mxu0 0.0
    %245 = vmatprep.subr.mxu0 0.0
    %246 = vmatpush1.msra.mxu0 0.0
    %247 = vmatprep.subr.mxu0 0.0
    %248 = vmatpush1.msra.mxu0 0.0
    %249 = vmatprep.subr.mxu0 0.0
    %250 = vmatpush1.msra.mxu0 0.0
    %251 = vmatprep.subr.mxu0 0.0
    %252 = vmatpush1.msra.mxu0 0.0
    %253 = vmatprep.subr.mxu0 0.0
    %254 = vmatpush1.msra.mxu0 0.0
    %255 = vmatprep.subr.mxu0 0.0
    %256 = vmatpush1.msra.mxu0 0.0
    %257 = vmatprep.subr.mxu0 0.0
    %258 = vmatpush1.msra.mxu0 0.0
    %259 = vmatprep.subr.mxu0 0.0
    %260 = vmatpush1.msra.mxu0 0.0
    %261 = vmatprep.subr.mxu0 0.0
    %262 = vmatpush1.msra.mxu0 0.0
    %263 = vmatprep.subr.mxu0 0.0
    %264 = vmatpush1.msra.mxu0 0.0
    %265 = vmatprep.subr.mxu0 0.0
    %266 = vmatpush1.msra.mxu0 0.0
    %267 = vmatprep.subr.mxu0 0.0
    %268 = vmatpush1.msra.mxu0 0.0
    %269 = vmatprep.subr.mxu0 0.0
    %270 = vmatpush1.msra.mxu0 0.0
    %271 = vmatprep.mubr.f32.mxu0 0.0
    %272 = vmatmul.mubr.f32.gmra.mrb[0].mxu0 %v205
    %v273 = vpop.f32.mrb[0].mxu0
    %v274 = vadd.f32 %v201, %v273
    %v275 = vpop.f32.mrb[0].mxu0
    %276 = vdwg.mxu0
    %vm277 = vcmask 254976
    %278 = vst.msk [vmem:[#allocation2] sm:$0x3] %vm277, %v274
    // Predicated region
    $region22: #{tpu_custom_call.1} parent=1 // pred_check
      _
    $region23: #{tpu_custom_call.1} parent=1 // pred_check_branch
      %280 = sbr.rel (0) target = $region25
    $region24: #{tpu_custom_call.1} parent=1 // pred_region
      %s282 = ssub.s32 32, 32
      %283 = vsyncadd [#allocation3], %s282
      %s285 = sshll.u32 [#allocation2], 4
      %s286 = int_to_ptr.vmem [resolvable:$true] %s285
      %288 = dma.vmem_to_hbm [thread:$0]  %s286, 32, %s5, [#allocation3]
    $region25: #{tpu_custom_call.1} parent=1 // pred_fallthru
      _
    // Predicated region
    $region26: #{tpu_custom_call.1} parent=1 // pred_check
      _
    $region27: #{tpu_custom_call.1} parent=1 // pred_check_branch
      %290 = sbr.rel (0) target = $region29
    $region28: #{tpu_custom_call.1} parent=1 // pred_region
      %291 = dma.done [#allocation3], 32
    $region29: #{tpu_custom_call.1} parent=1 // pred_fallthru
      _
    %292 = vsyncpa [#allocation3], 1

</llo_original>
